<compile_context>
chip_gen: v6e
topology: v6e:2x2x1
jax: 0.10.0
libtpu: 0.0.40
codegen_flags: <defaults>
</compile_context>

<pallas_src>
import math
import functools

import jax
import jax.numpy as jnp
from jax.experimental import pallas as pl
from jax.experimental.pallas import tpu as pltpu


LANE = 128   # lane width (last dim)
SUB = 16     # row multiple: bf16 tiles are (16, 128)


def _round_up(n, m):
    return ((n + m - 1) // m) * m


def _vmem_bytes_estimate(bb, tp, da, dr, hp):
    """Rough per-grid-step VMEM footprint (bytes) for BB selection."""
    rows = bb * tp
    bf2, f4 = 2, 4
    # double-buffered bf16 I/O slabs: x, y, out  +  adj block
    io = 2 * rows * (da + 2 * dr) * bf2 + 2 * bb * tp * tp * bf2
    # single-buffered bf16 weights + f32 biases (tiny)
    wts = (da * hp + dr * 2 * hp + hp * dr) * bf2 + (4 * hp + dr) * f4
    # in-kernel f32 intermediates: q, kv(2H), t, out, logits, probs
    interm = rows * (4 * hp + dr) * f4 + 2 * bb * tp * tp * f4
    return io + wts + interm


def _cross_attention_kernel(x_ref, y_ref, adj_ref,
                            wq_ref, bq_ref,
                            wkv_ref, bkv_ref,
                            wo_ref, bo_ref,
                            o_ref, *, block_b, t_valid):
    bb = block_b
    rows = x_ref.shape[0]          # BB * Tp
    tp = rows // bb
    hp = wq_ref.shape[-1]

    # --- Projections: single big lane-dense GEMMs over BB*Tp rows ------------
    # Q projection (bf16 x bf16 -> f32 accumulate). 1/sqrt(H) already folded
    # into wq/bq by the wrapper.
    q = jnp.dot(x_ref[...], wq_ref[...],
                preferred_element_type=jnp.float32) + bq_ref[...]

    # Fused K|V projection over the same y operand (one MXU pass, 2*Hp lanes).
    kv = jnp.dot(y_ref[...], wkv_ref[...],
                 preferred_element_type=jnp.float32) + bkv_ref[...]

    # Reshape back to (BB, Tp, Hp): exact (sublane,lane)-tile regrouping.
    q3 = q.reshape(bb, tp, hp)
    k3 = kv[:, :hp].reshape(bb, tp, hp)
    v3 = kv[:, hp:].reshape(bb, tp, hp)

    # --- Attention ------------------------------------------------------------
    # Batched contraction on the last (feature) dims — native MXU trans_b form,
    # no explicit K transpose (no XLU pass).
    s = jnp.einsum("bqd,bkd->bqk", q3, k3, preferred_element_type=jnp.float32)
    s = s + adj_ref[...].astype(jnp.float32)

    # Mask padded key columns in-kernel (cheap VPU compare+select) instead of
    # a value-initialized pad of adj in the wrapper.
    if tp > t_valid:
        col = jax.lax.broadcasted_iota(jnp.int32, (tp, tp), 1)
        s = jnp.where((col >= t_valid)[None, :, :], -1e30, s)

    s = s - jnp.max(s, axis=-1, keepdims=True)
    p = jnp.exp(s)
    p = p * pl.reciprocal(jnp.sum(p, axis=-1, keepdims=True), approx=True)

    t = jnp.einsum("bqk,bkd->bqd", p, v3, preferred_element_type=jnp.float32)

    # --- Output projection (one big GEMM over BB*Tp rows) ---------------------
    out = jnp.dot(t.reshape(bb * tp, hp), wo_ref[...],
                  preferred_element_type=jnp.float32) + bo_ref[...]
    o_ref[...] = out.astype(o_ref.dtype)


def cross_attention(x, y, adj, params, *, block_b=None, out_dtype=jnp.bfloat16):
    """Pallas forward pass of CrossAttention (n_heads=1)."""
    B, T, dfaud = x.shape
    _, _, dfrgb = y.shape
    H = params["wq"].shape[1]
    norm_fact = 1.0 / math.sqrt(H)

    Da = _round_up(dfaud, LANE)
    Dr = _round_up(dfrgb, LANE)
    Hp = _round_up(H, LANE)
    Tp = _round_up(T, SUB)

    # ---- Batch-block (grid granularity) selection ----------------------------
    if block_b is None:
        # ~1024 rows per grid step: fills MXU M, amortizes per-step overhead.
        block_b = max(1, min(B, -(-1024 // Tp)))
        # v7x has 2 TensorCores sharing the "parallel" grid axis: keep >= 2
        # grid steps whenever B allows it (no-op for v5e/v6e).
        block_b = min(block_b, max(1, -(-B // 2)))
        # VMEM budget sized for v7x (64 MiB physical / 32 MiB scoped default).
        budget = 40 * 1024 * 1024
        while block_b > 1 and _vmem_bytes_estimate(block_b, Tp, Da, Dr, Hp) > budget:
            block_b -= 1
    BB = max(1, min(block_b, B))
    Bp = _round_up(B, BB)

    est = _vmem_bytes_estimate(BB, Tp, Da, Dr, Hp)
    vmem_limit = int(min(56 * 1024 * 1024,
                         max(32 * 1024 * 1024, int(1.5 * est))))

    f32, bf16 = jnp.float32, jnp.bfloat16

    def pad3(a, b_to, t_to, d_to):
        return jnp.pad(a, ((0, b_to - a.shape[0]),
                           (0, t_to - a.shape[1]),
                           (0, d_to - a.shape[2])))

    def pad2(a, r_to, c_to, dtype):
        return jnp.pad(a, ((0, r_to - a.shape[0]),
                           (0, c_to - a.shape[1]))).astype(dtype)

    # Inputs: bf16, zero-padded, flattened to (Bp*Tp, d) lane-dense slabs.
    xp = pad3(x, Bp, Tp, Da).astype(bf16).reshape(Bp * Tp, Da)
    yp = pad3(y, Bp, Tp, Dr).astype(bf16).reshape(Bp * Tp, Dr)

    # adj travels in bf16 (halves HBM bytes of the largest input). Plain zero
    # pad only — padded key columns are masked inside the kernel.
    adjp = pad3(adj, Bp, Tp, Tp).astype(bf16)

    # Weights: bf16, zero-padded; norm_fact folded into wq/bq; K|V fused along
    # the output dim. Biases stay f32 (added to f32 accumulators).
    wq = pad2(params["wq"] * norm_fact, Da, Hp, bf16)
    wk = pad2(params["wk"], Dr, Hp, bf16)
    wv = pad2(params["wv"], Dr, Hp, bf16)
    wkv = jnp.concatenate([wk, wv], axis=1)                  # (Dr, 2*Hp)
    wo = pad2(params["wo"], Hp, Dr, bf16)
    bq = pad2(params["bq"] * norm_fact, 1, Hp, f32)
    bkv = jnp.concatenate([pad2(params["bk"], 1, Hp, f32),
                           pad2(params["bv"], 1, Hp, f32)], axis=1)
    bo = pad2(params["bo"], 1, Dr, f32)

    kernel = functools.partial(_cross_attention_kernel, block_b=BB, t_valid=T)

    # Grid-invariant weight/bias blocks: single-buffered (no re-DMA, no
    # duplicated VMEM copy).
    def const_spec(shape):
        return pl.BlockSpec(shape, lambda b: tuple(0 for _ in shape),
                            pipeline_mode=pl.Buffered(1))

    out_pad = pl.pallas_call(
        kernel,
        out_shape=jax.ShapeDtypeStruct((Bp * Tp, Dr), out_dtype),
        grid_spec=pltpu.PrefetchScalarGridSpec(
            num_scalar_prefetch=0,
            grid=(Bp // BB,),
            in_specs=[
                pl.BlockSpec((BB * Tp, Da), lambda b: (b, 0)),     # x slab
                pl.BlockSpec((BB * Tp, Dr), lambda b: (b, 0)),     # y slab
                pl.BlockSpec((BB, Tp, Tp), lambda b: (b, 0, 0)),   # adj (bf16)
                const_spec((Da, Hp)), const_spec((1, Hp)),         # wq, bq
                const_spec((Dr, 2 * Hp)), const_spec((1, 2 * Hp)), # wkv, bkv
                const_spec((Hp, Dr)), const_spec((1, Dr)),         # wo, bo
            ],
            out_specs=pl.BlockSpec((BB * Tp, Dr), lambda b: (b, 0)),
        ),
        compiler_params=pltpu.CompilerParams(
            dimension_semantics=("parallel",),
            vmem_limit_bytes=vmem_limit),
    )(xp, yp, adjp, wq, bq, wkv, bkv, wo, bo)

    # Strip the padding back off.
    out = out_pad.reshape(Bp, Tp, Dr)[:B, :T, :dfrgb]
    return out


def init_params(key, dfaud, dfrgb, xat_hdim):
    """Deterministic params; weights stored as (in_dim, out_dim)."""
    ks = jax.random.split(key, 8)

    def lin(kw, kb, d_in, d_out):
        bound = 1.0 / math.sqrt(d_in)
        w = jax.random.uniform(kw, (d_in, d_out), jnp.float32, -bound, bound)
        b = jax.random.uniform(kb, (1, d_out), jnp.float32, -bound, bound)
        return w, b

    wq, bq = lin(ks[0], ks[1], dfaud, xat_hdim)
    wk, bk = lin(ks[2], ks[3], dfrgb, xat_hdim)
    wv, bv = lin(ks[4], ks[5], dfrgb, xat_hdim)
    wo, bo = lin(ks[6], ks[7], xat_hdim, dfrgb)
    return dict(wq=wq, bq=bq, wk=wk, bk=bk, wv=wv, bv=bv, wo=wo, bo=bo)


def cross_attention_ref(x, y, adj, params):
    """Pure-JAX reference mirroring the PyTorch forward (n_heads=1).

    Inputs/weights/adj are cast through bf16 exactly like the kernel wrapper so
    the comparison isolates kernel logic from the (intentional) bf16 transport.
    """
    H = params["wq"].shape[1]
    nf = 1.0 / math.sqrt(H)
    bf = lambda a: a.astype(jnp.bfloat16).astype(jnp.float32)
    q = bf(x) @ bf(params["wq"]) + params["bq"]
    k = bf(y) @ bf(params["wk"]) + params["bk"]
    v = bf(y) @ bf(params["wv"]) + params["bv"]
    att = jnp.einsum("btd,bsd->bts", q, k) * nf + bf(adj)
    att = jax.nn.softmax(att, axis=-1)
    t = jnp.einsum("bts,bsd->btd", att, v)
    return t @ bf(params["wo"]) + params["bo"]


if __name__ == "__main__":
    B, T = 2, 8
    dfaud, dfrgb, xat_hdim = 32, 48, 32

    key = jax.random.PRNGKey(0)
    kx, ky, kadj, kp = jax.random.split(key, 4)
    x = jax.random.normal(kx, (B, T, dfaud), jnp.float32)
    y = jax.random.normal(ky, (B, T, dfrgb), jnp.float32)
    adj = jax.random.normal(kadj, (B, T, T), jnp.float32)

    params = init_params(kp, dfaud, dfrgb, xat_hdim)

    out = cross_attention(x, y, adj, params)
    out = jax.block_until_ready(out)

    ref = cross_attention_ref(x, y, adj, params)
    assert out.shape == (B, T, dfrgb)
    out_f32 = out.astype(jnp.float32)
    max_err = float(jnp.max(jnp.abs(out_f32 - ref)))
    assert jnp.allclose(out_f32, ref, atol=2e-2, rtol=2e-2), max_err

    print("KERNEL_OK")
</pallas_src>

<mosaic_0001>
module attributes {stable_mosaic.version = 11 : i64} {
  func.func @_cross_attention_kernel(%arg0: i32, %arg1: memref<16x128xbf16, #tpu.memory_space<vmem>>, %arg2: memref<16x128xbf16, #tpu.memory_space<vmem>>, %arg3: memref<1x16x16xbf16, #tpu.memory_space<vmem>>, %arg4: memref<128x128xbf16, #tpu.memory_space<vmem>>, %arg5: memref<1x128xf32, #tpu.memory_space<vmem>>, %arg6: memref<128x256xbf16, #tpu.memory_space<vmem>>, %arg7: memref<1x256xf32, #tpu.memory_space<vmem>>, %arg8: memref<128x128xbf16, #tpu.memory_space<vmem>>, %arg9: memref<1x128xf32, #tpu.memory_space<vmem>>, %arg10: memref<16x128xbf16, #tpu.memory_space<vmem>>) attributes {dimension_semantics = [#tpu.dimension_semantics<parallel>], iteration_bounds = array<i64: 2>, scalar_prefetch = 0 : i64, scratch_operands = 0 : i64, tpu.core_type = #tpu.core_type<tc>, window_params = [{transform_indices = @transform_0, window_bounds = array<i64: 16, 128>}, {transform_indices = @transform_1, window_bounds = array<i64: 16, 128>}, {transform_indices = @transform_2, window_bounds = array<i64: 1, 16, 16>}, {pipeline_mode = #tpu.pipeline_mode<synchronous>, transform_indices = @transform_3, window_bounds = array<i64: 128, 128>}, {pipeline_mode = #tpu.pipeline_mode<synchronous>, transform_indices = @transform_4, window_bounds = array<i64: 1, 128>}, {pipeline_mode = #tpu.pipeline_mode<synchronous>, transform_indices = @transform_5, window_bounds = array<i64: 128, 256>}, {pipeline_mode = #tpu.pipeline_mode<synchronous>, transform_indices = @transform_6, window_bounds = array<i64: 1, 256>}, {pipeline_mode = #tpu.pipeline_mode<synchronous>, transform_indices = @transform_7, window_bounds = array<i64: 128, 128>}, {pipeline_mode = #tpu.pipeline_mode<synchronous>, transform_indices = @transform_8, window_bounds = array<i64: 1, 128>}, {transform_indices = @transform_9, window_bounds = array<i64: 16, 128>}]} {
    %c0 = arith.constant 0 : index
    %c0_0 = arith.constant 0 : index
    %0 = vector.load %arg1[%c0, %c0_0] : memref<16x128xbf16, #tpu.memory_space<vmem>>, vector<16x128xbf16>
    %c0_1 = arith.constant 0 : index
    %c0_2 = arith.constant 0 : index
    %1 = vector.load %arg4[%c0_1, %c0_2] : memref<128x128xbf16, #tpu.memory_space<vmem>>, vector<128x128xbf16>
    %cst = arith.constant dense<0.000000e+00> : vector<16x128xf32>
    %2 = tpu.matmul %0, %1, %cst {dimension_numbers = #tpu.dot_dimension_numbers<[1], [0], [0], [1], [0, 0, 1, 1], [], []>} : vector<16x128xbf16>, vector<128x128xbf16>, vector<16x128xf32> -> vector<16x128xf32>
    %c0_3 = arith.constant 0 : index
    %c0_4 = arith.constant 0 : index
    %3 = vector.load %arg5[%c0_3, %c0_4] : memref<1x128xf32, #tpu.memory_space<vmem>>, vector<1x128xf32>
    %4 = vector.broadcast %3 : vector<1x128xf32> to vector<16x128xf32>
    %5 = arith.addf %2, %4 : vector<16x128xf32>
    %c0_5 = arith.constant 0 : index
    %c0_6 = arith.constant 0 : index
    %6 = vector.load %arg2[%c0_5, %c0_6] : memref<16x128xbf16, #tpu.memory_space<vmem>>, vector<16x128xbf16>
    %c0_7 = arith.constant 0 : index
    %c0_8 = arith.constant 0 : index
    %7 = vector.load %arg6[%c0_7, %c0_8] : memref<128x256xbf16, #tpu.memory_space<vmem>>, vector<128x256xbf16>
    %cst_9 = arith.constant dense<0.000000e+00> : vector<16x256xf32>
    %8 = tpu.matmul %6, %7, %cst_9 {dimension_numbers = #tpu.dot_dimension_numbers<[1], [0], [0], [1], [0, 0, 1, 1], [], []>} : vector<16x128xbf16>, vector<128x256xbf16>, vector<16x256xf32> -> vector<16x256xf32>
    %c0_10 = arith.constant 0 : index
    %c0_11 = arith.constant 0 : index
    %9 = vector.load %arg7[%c0_10, %c0_11] : memref<1x256xf32, #tpu.memory_space<vmem>>, vector<1x256xf32>
    %10 = vector.broadcast %9 : vector<1x256xf32> to vector<16x256xf32>
    %11 = arith.addf %8, %10 : vector<16x256xf32>
    %12 = vector.shape_cast %5 : vector<16x128xf32> to vector<1x16x128xf32>
    %13 = vector.extract_strided_slice %11 {offsets = [0, 0], sizes = [16, 128], strides = [1, 1]} : vector<16x256xf32> to vector<16x128xf32>
    %14 = vector.shape_cast %13 : vector<16x128xf32> to vector<1x16x128xf32>
    %15 = vector.extract_strided_slice %11 {offsets = [0, 128], sizes = [16, 128], strides = [1, 1]} : vector<16x256xf32> to vector<16x128xf32>
    %16 = vector.shape_cast %15 : vector<16x128xf32> to vector<1x16x128xf32>
    "tpu.trace_start"() <{level = 10 : i32, message = "bqd,bkd->bqk"}> : () -> ()
    %cst_12 = arith.constant dense<0.000000e+00> : vector<1x16x16xf32>
    %17 = tpu.matmul %12, %14, %cst_12 {dimension_numbers = #tpu.dot_dimension_numbers<[2], [2], [1], [1], [0, 0, 0, 1, 1, 1], [0], [0]>} : vector<1x16x128xf32>, vector<1x16x128xf32>, vector<1x16x16xf32> -> vector<1x16x16xf32>
    "tpu.trace_stop"() : () -> ()
    %c0_13 = arith.constant 0 : index
    %c0_14 = arith.constant 0 : index
    %c0_15 = arith.constant 0 : index
    %18 = vector.load %arg3[%c0_13, %c0_14, %c0_15] : memref<1x16x16xbf16, #tpu.memory_space<vmem>>, vector<1x16x16xbf16>
    %19 = arith.extf %18 : vector<1x16x16xbf16> to vector<1x16x16xf32>
    %20 = arith.addf %17, %19 : vector<1x16x16xf32>
    %21 = tpu.iota {dimensions = array<i32: 1>} : vector<16x16xi32>
    %c8_i32 = arith.constant 8 : i32
    %22 = vector.broadcast %c8_i32 : i32 to vector<16x16xi32>
    %23 = arith.cmpi sge, %21, %22 : vector<16x16xi32>
    %24 = vector.shape_cast %23 : vector<16x16xi1> to vector<1x16x16xi1>
    %cst_16 = arith.constant -1.000000e+30 : f32
    %25 = vector.broadcast %cst_16 : f32 to vector<1x16x16xf32>
    %26 = arith.select %24, %25, %20 : vector<1x16x16xi1>, vector<1x16x16xf32>
    %cst_17 = arith.constant dense<0xFF800000> : vector<1x16xf32>
    %27 = vector.multi_reduction <maximumf>, %26, %cst_17 [2] : vector<1x16x16xf32> to vector<1x16xf32>
    %28 = vector.shape_cast %27 : vector<1x16xf32> to vector<1x16x1xf32>
    %29 = vector.broadcast %28 : vector<1x16x1xf32> to vector<1x16x16xf32>
    %30 = arith.subf %26, %29 : vector<1x16x16xf32>
    %31 = math.exp %30 : vector<1x16x16xf32>
    %cst_18 = arith.constant dense<0.000000e+00> : vector<1x16xf32>
    %32 = vector.multi_reduction <add>, %31, %cst_18 [2] : vector<1x16x16xf32> to vector<1x16xf32>
    %33 = vector.shape_cast %32 : vector<1x16xf32> to vector<1x16x1xf32>
    %34 = tpu.reciprocal %33 {approx = true} : vector<1x16x1xf32> -> vector<1x16x1xf32>
    %35 = vector.broadcast %34 : vector<1x16x1xf32> to vector<1x16x16xf32>
    %36 = arith.mulf %31, %35 : vector<1x16x16xf32>
    "tpu.trace_start"() <{level = 10 : i32, message = "bqk,bkd->bqd"}> : () -> ()
    %cst_19 = arith.constant dense<0.000000e+00> : vector<1x16x128xf32>
    %37 = tpu.matmul %36, %16, %cst_19 {dimension_numbers = #tpu.dot_dimension_numbers<[2], [1], [1], [2], [0, 0, 0, 1, 1, 2], [0], [0]>} : vector<1x16x16xf32>, vector<1x16x128xf32>, vector<1x16x128xf32> -> vector<1x16x128xf32>
    "tpu.trace_stop"() : () -> ()
    %38 = vector.shape_cast %37 : vector<1x16x128xf32> to vector<16x128xf32>
    %c0_20 = arith.constant 0 : index
    %c0_21 = arith.constant 0 : index
    %39 = vector.load %arg8[%c0_20, %c0_21] : memref<128x128xbf16, #tpu.memory_space<vmem>>, vector<128x128xbf16>
    %cst_22 = arith.constant dense<0.000000e+00> : vector<16x128xf32>
    %40 = tpu.matmul %38, %39, %cst_22 {dimension_numbers = #tpu.dot_dimension_numbers<[1], [0], [0], [1], [0, 0, 1, 1], [], []>} : vector<16x128xf32>, vector<128x128xbf16>, vector<16x128xf32> -> vector<16x128xf32>
    %c0_23 = arith.constant 0 : index
    %c0_24 = arith.constant 0 : index
    %41 = vector.load %arg9[%c0_23, %c0_24] : memref<1x128xf32, #tpu.memory_space<vmem>>, vector<1x128xf32>
    %42 = vector.broadcast %41 : vector<1x128xf32> to vector<16x128xf32>
    %43 = arith.addf %40, %42 : vector<16x128xf32>
    %44 = arith.truncf %43 : vector<16x128xf32> to vector<16x128xbf16>
    %c0_25 = arith.constant 0 : index
    %c0_26 = arith.constant 0 : index
    %45 = vector.load %arg10[%c0_25, %c0_26] : memref<16x128xbf16, #tpu.memory_space<vmem>>, vector<16x128xbf16>
    tpu.vector_store %arg10[%c0_25, %c0_26], %44 {strides = array<i32>} : memref<16x128xbf16, #tpu.memory_space<vmem>>, vector<16x128xbf16>,
    return
  }
  func.func @transform_0(%arg0: i32) -> (i32, i32) {
    %c0_i32 = arith.constant 0 : i32
    %c0_i32_0 = arith.constant 0 : i32
    return %arg0, %c0_i32 : i32, i32
  }
  func.func @transform_1(%arg0: i32) -> (i32, i32) {
    %c0_i32 = arith.constant 0 : i32
    %c0_i32_0 = arith.constant 0 : i32
    return %arg0, %c0_i32 : i32, i32
  }
  func.func @transform_2(%arg0: i32) -> (i32, i32, i32) {
    %c0_i32 = arith.constant 0 : i32
    %c0_i32_0 = arith.constant 0 : i32
    %c0_i32_1 = arith.constant 0 : i32
    return %arg0, %c0_i32, %c0_i32_0 : i32, i32, i32
  }
  func.func @transform_3(%arg0: i32) -> (i32, i32) {
    %c0_i32 = arith.constant 0 : i32
    %c0_i32_0 = arith.constant 0 : i32
    %c0_i32_1 = arith.constant 0 : i32
    return %c0_i32, %c0_i32_0 : i32, i32
  }
  func.func @transform_4(%arg0: i32) -> (i32, i32) {
    %c0_i32 = arith.constant 0 : i32
    %c0_i32_0 = arith.constant 0 : i32
    %c0_i32_1 = arith.constant 0 : i32
    return %c0_i32, %c0_i32_0 : i32, i32
  }
  func.func @transform_5(%arg0: i32) -> (i32, i32) {
    %c0_i32 = arith.constant 0 : i32
    %c0_i32_0 = arith.constant 0 : i32
    %c0_i32_1 = arith.constant 0 : i32
    return %c0_i32, %c0_i32_0 : i32, i32
  }
  func.func @transform_6(%arg0: i32) -> (i32, i32) {
    %c0_i32 = arith.constant 0 : i32
    %c0_i32_0 = arith.constant 0 : i32
    %c0_i32_1 = arith.constant 0 : i32
    return %c0_i32, %c0_i32_0 : i32, i32
  }
  func.func @transform_7(%arg0: i32) -> (i32, i32) {
    %c0_i32 = arith.constant 0 : i32
    %c0_i32_0 = arith.constant 0 : i32
    %c0_i32_1 = arith.constant 0 : i32
    return %c0_i32, %c0_i32_0 : i32, i32
  }
  func.func @transform_8(%arg0: i32) -> (i32, i32) {
    %c0_i32 = arith.constant 0 : i32
    %c0_i32_0 = arith.constant 0 : i32
    %c0_i32_1 = arith.constant 0 : i32
    return %c0_i32, %c0_i32_0 : i32, i32
  }
  func.func @transform_9(%arg0: i32) -> (i32, i32) {
    %c0_i32 = arith.constant 0 : i32
    %c0_i32_0 = arith.constant 0 : i32
    return %arg0, %c0_i32 : i32, i32
  }
}

</mosaic_0001>

<llo_original>
// kernel: tpu_custom_call.1
$region0: #{tpu_custom_call.1}
  #allocation0 [shape = 'u32[]', space=smem, size = 0x4, offset = 0x4, fixed_abs, tag = 'smem constant byte address 0x4 - core index']
  #allocation1 [shape = 'u32[144,128]{1,0:T(1,128)}', space=vmem, size = 0x12000, scoped, tag = 'internal scratch']
  %s0 = inlined_call_operand.hbm [shape: bf16[32,128], index: 0, kind: input, shape index: {}]
  %s1 = inlined_call_operand.hbm [shape: bf16[32,128], index: 1, kind: input, shape index: {}]
  %s2 = inlined_call_operand.hbm [shape: bf16[2,16,16], index: 2, kind: input, shape index: {}]
  %s3 = inlined_call_operand.hbm [shape: bf16[128,128], index: 3, kind: input, shape index: {}]
  %s4 = inlined_call_operand.vmem [shape: f32[1,128], index: 4, kind: input, shape index: {}]
  %s5 = inlined_call_operand.hbm [shape: bf16[128,256], index: 5, kind: input, shape index: {}]
  %s6 = inlined_call_operand.vmem [shape: f32[1,256], index: 6, kind: input, shape index: {}]
  %s7 = inlined_call_operand.hbm [shape: bf16[128,128], index: 7, kind: input, shape index: {}]
  %s8 = inlined_call_operand.vmem [shape: f32[1,128], index: 8, kind: input, shape index: {}]
  %s9 = inlined_call_operand.hbm [shape: bf16[32,128], index: 9, kind: output, shape index: {}]
  %s10 = sld [smem:[#allocation0]]
  $region93: #{tpu_custom_call.1} parent=0
    _
  %s12 = ssub.s32 1, %s10
  %s13 = scalar_select 0, %s12, %s10
  $region1: #{tpu_custom_call.1} parent=0
    #allocation2 [shape = 'u8[8192]{0}', space=vmem, size = 0x2000, scoped, tag = 'input window, operand 0']
    #allocation3 [shape = 's32[2]{0}', space=sflag, size = 0x8, scoped, tag = 'scoped memory for tpu_custom_call.1']
    #allocation4 [shape = 's32[2]{0}', space=sflag, size = 0x8, scoped, tag = 'scoped memory for tpu_custom_call.1']
    #allocation5 [shape = 'u8[8192]{0}', space=vmem, size = 0x2000, scoped, tag = 'input window, operand 1']
    #allocation6 [shape = 's32[2]{0}', space=sflag, size = 0x8, scoped, tag = 'scoped memory for tpu_custom_call.1']
    #allocation7 [shape = 'u8[8192]{0}', space=vmem, size = 0x2000, scoped, tag = 'input window, operand 2']
    #allocation8 [shape = 'u8[32768]{0}', space=vmem, size = 0x8000, scoped, tag = 'input window, operand 3, single buffered']
    #allocation9 [shape = 's32[1]{0}', space=sflag, size = 0x4, scoped, tag = 'scoped memory for tpu_custom_call.1']
    #allocation10 [shape = 'u8[65536]{0}', space=vmem, size = 0x10000, scoped, tag = 'input window, operand 5, single buffered']
    #allocation11 [shape = 'u8[32768]{0}', space=vmem, size = 0x8000, scoped, tag = 'input window, operand 7, single buffered']
    #allocation12 [shape = 's32[1]{0}', space=sflag, size = 0x4, scoped, tag = 'scoped memory for tpu_custom_call.1']
    #allocation13 [shape = 'u8[8192]{0}', space=vmem, size = 0x2000, scoped, tag = 'output window, operand 0']
    %14 = vsyncpa [#allocation3], 0
    %s15 = scalar_lea.sflag [#allocation3], 1
    %16 = vsyncpa %s15, 0
    %17 = vsyncpa [#allocation6], 0
    %s18 = scalar_lea.sflag [#allocation6], 1
    %19 = vsyncpa %s18, 0
    %20 = vsyncpa [#allocation9], 0
    %21 = vsyncpa [#allocation12], 0
    %22 = vsyncpa [#allocation4], 0
    %s23 = scalar_lea.sflag [#allocation4], 1
    %24 = vsyncpa %s23, 0
    loop: start=0, step=1, limit=4
    $region2: #{tpu_custom_call.1} parent=1 // loop_pre_header
      _
    $region3: #{tpu_custom_call.1} parent=1 // loop_header
      %s26 = sphi 0, %s30
      %p27 = scmp.ge.s32.totalorder %s26, 4
      %s36 = sphi 0, %s38
      %s39 = sphi 0, %s36
      %s40 = sphi 0, %s39
      %s56 = sphi 0, %s40
      %s62 = sphi 0, %s64
      %s65 = sphi 0, %s62
      %s66 = sphi 0, %s65
      %s82 = sphi 0, %s66
      %s88 = sphi 0, %s90
      %s91 = sphi 0, %s88
      %s92 = sphi 0, %s91
      %s108 = sphi 0, %s92
      %s112 = sphi 0, %s112
      %s114 = sphi 0, %s112
      %s115 = sphi 0, %s114
      %s129 = sphi 0, %s115
      %s133 = sphi 0, %s133
      %s135 = sphi 0, %s133
      %s136 = sphi 0, %s135
      %s150 = sphi 0, %s136
      %s154 = sphi 0, %s154
      %s156 = sphi 0, %s154
      %s157 = sphi 0, %s156
      %s171 = sphi 0, %s157
      %s175 = sphi 0, %s175
      %s177 = sphi 0, %s175
      %s178 = sphi 0, %s177
      %s192 = sphi 0, %s178
      %s196 = sphi 0, %s196
      %s198 = sphi 0, %s196
      %s199 = sphi 0, %s198
      %s213 = sphi 0, %s199
      %s217 = sphi 0, %s217
      %s219 = sphi 0, %s217
      %s220 = sphi 0, %s219
      %s234 = sphi 0, %s220
      %s240 = sphi 0, %s242
      %s243 = sphi 0, %s240
      %s244 = sphi 0, %s243
      %s260 = sphi 0, %s244
    $region4: #{tpu_custom_call.1} parent=1 // loop_header_branch
      %29 = sbr.rel (%p27) target = $region8
    $region5: #{tpu_custom_call.1} parent=1 // loop_body
      %s31 = ssub.s32 %s26, 1
      %s32 = ssub.s32 %s26, 2
      %s33 = sadd.s32 %s26, 1
      %s34 = ssub.s32 %s26, %s33
      %p35 = scmp.eq.s32.totalorder %s34, 0
      %s37 = sadd.s32 %s36, 1
      %s38 = scalar_select %p35, %s36, %s37
      %p41 = pneg %p35
      %p42 = scmp.eq.s32.totalorder %s26, 1
      %p43 = por %p41, %p42
      %p44 = scmp.ne.s32.totalorder %s36, %s39
      %p45 = scmp.eq.s32.totalorder %s26, 0
      %p46 = por %p44, %p45
      %p47 = scmp.ne.s32.totalorder %s36, %s39
      %p48 = scmp.eq.s32.totalorder %s31, 1
      %p49 = por %p47, %p48
      %p50 = scmp.ne.s32.totalorder %s39, %s40
      %p51 = scmp.eq.s32.totalorder %s31, 0
      %p52 = por %p50, %p51
      %p53 = scmp.ne.s32.totalorder %s39, %s40
      %p54 = scmp.eq.s32.totalorder %s32, 1
      %p55 = por %p53, %p54
      %p57 = scmp.ne.s32.totalorder %s40, %s56
      %p58 = scmp.eq.s32.totalorder %s32, 0
      %p59 = por %p57, %p58
      %s60 = ssub.s32 %s26, %s33
      %p61 = scmp.eq.s32.totalorder %s60, 0
      %s63 = sadd.s32 %s62, 1
      %s64 = scalar_select %p61, %s62, %s63
      %p67 = pneg %p61
      %p68 = scmp.eq.s32.totalorder %s26, 1
      %p69 = por %p67, %p68
      %p70 = scmp.ne.s32.totalorder %s62, %s65
      %p71 = scmp.eq.s32.totalorder %s26, 0
      %p72 = por %p70, %p71
      %p73 = scmp.ne.s32.totalorder %s62, %s65
      %p74 = scmp.eq.s32.totalorder %s31, 1
      %p75 = por %p73, %p74
      %p76 = scmp.ne.s32.totalorder %s65, %s66
      %p77 = scmp.eq.s32.totalorder %s31, 0
      %p78 = por %p76, %p77
      %p79 = scmp.ne.s32.totalorder %s65, %s66
      %p80 = scmp.eq.s32.totalorder %s32, 1
      %p81 = por %p79, %p80
      %p83 = scmp.ne.s32.totalorder %s66, %s82
      %p84 = scmp.eq.s32.totalorder %s32, 0
      %p85 = por %p83, %p84
      %s86 = ssub.s32 %s26, %s33
      %p87 = scmp.eq.s32.totalorder %s86, 0
      %s89 = sadd.s32 %s88, 1
      %s90 = scalar_select %p87, %s88, %s89
      %p93 = pneg %p87
      %p94 = scmp.eq.s32.totalorder %s26, 1
      %p95 = por %p93, %p94
      %p96 = scmp.ne.s32.totalorder %s88, %s91
      %p97 = scmp.eq.s32.totalorder %s26, 0
      %p98 = por %p96, %p97
      %p99 = scmp.ne.s32.totalorder %s88, %s91
      %p100 = scmp.eq.s32.totalorder %s31, 1
      %p101 = por %p99, %p100
      %p102 = scmp.ne.s32.totalorder %s91, %s92
      %p103 = scmp.eq.s32.totalorder %s31, 0
      %p104 = por %p102, %p103
      %p105 = scmp.ne.s32.totalorder %s91, %s92
      %p106 = scmp.eq.s32.totalorder %s32, 1
      %p107 = por %p105, %p106
      %p109 = scmp.ne.s32.totalorder %s92, %s108
      %p110 = scmp.eq.s32.totalorder %s32, 0
      %p111 = por %p109, %p110
      %s113 = sadd.s32 %s112, 1
      %p116 = scmp.eq.s32.totalorder %s26, 1
      %p117 = scmp.ne.s32.totalorder %s112, %s114
      %p118 = scmp.eq.s32.totalorder %s26, 0
      %p119 = por %p117, %p118
      %p120 = scmp.ne.s32.totalorder %s112, %s114
      %p121 = scmp.eq.s32.totalorder %s31, 1
      %p122 = por %p120, %p121
      %p123 = scmp.ne.s32.totalorder %s114, %s115
      %p124 = scmp.eq.s32.totalorder %s31, 0
      %p125 = por %p123, %p124
      %p126 = scmp.ne.s32.totalorder %s114, %s115
      %p127 = scmp.eq.s32.totalorder %s32, 1
      %p128 = por %p126, %p127
      %p130 = scmp.ne.s32.totalorder %s115, %s129
      %p131 = scmp.eq.s32.totalorder %s32, 0
      %p132 = por %p130, %p131
      %s134 = sadd.s32 %s133, 1
      %p137 = scmp.eq.s32.totalorder %s26, 1
      %p138 = scmp.ne.s32.totalorder %s133, %s135
      %p139 = scmp.eq.s32.totalorder %s26, 0
      %p140 = por %p138, %p139
      %p141 = scmp.ne.s32.totalorder %s133, %s135
      %p142 = scmp.eq.s32.totalorder %s31, 1
      %p143 = por %p141, %p142
      %p144 = scmp.ne.s32.totalorder %s135, %s136
      %p145 = scmp.eq.s32.totalorder %s31, 0
      %p146 = por %p144, %p145
      %p147 = scmp.ne.s32.totalorder %s135, %s136
      %p148 = scmp.eq.s32.totalorder %s32, 1
      %p149 = por %p147, %p148
      %p151 = scmp.ne.s32.totalorder %s136, %s150
      %p152 = scmp.eq.s32.totalorder %s32, 0
      %p153 = por %p151, %p152
      %s155 = sadd.s32 %s154, 1
      %p158 = scmp.eq.s32.totalorder %s26, 1
      %p159 = scmp.ne.s32.totalorder %s154, %s156
      %p160 = scmp.eq.s32.totalorder %s26, 0
      %p161 = por %p159, %p160
      %p162 = scmp.ne.s32.totalorder %s154, %s156
      %p163 = scmp.eq.s32.totalorder %s31, 1
      %p164 = por %p162, %p163
      %p165 = scmp.ne.s32.totalorder %s156, %s157
      %p166 = scmp.eq.s32.totalorder %s31, 0
      %p167 = por %p165, %p166
      %p168 = scmp.ne.s32.totalorder %s156, %s157
      %p169 = scmp.eq.s32.totalorder %s32, 1
      %p170 = por %p168, %p169
      %p172 = scmp.ne.s32.totalorder %s157, %s171
      %p173 = scmp.eq.s32.totalorder %s32, 0
      %p174 = por %p172, %p173
      %s176 = sadd.s32 %s175, 1
      %p179 = scmp.eq.s32.totalorder %s26, 1
      %p180 = scmp.ne.s32.totalorder %s175, %s177
      %p181 = scmp.eq.s32.totalorder %s26, 0
      %p182 = por %p180, %p181
      %p183 = scmp.ne.s32.totalorder %s175, %s177
      %p184 = scmp.eq.s32.totalorder %s31, 1
      %p185 = por %p183, %p184
      %p186 = scmp.ne.s32.totalorder %s177, %s178
      %p187 = scmp.eq.s32.totalorder %s31, 0
      %p188 = por %p186, %p187
      %p189 = scmp.ne.s32.totalorder %s177, %s178
      %p190 = scmp.eq.s32.totalorder %s32, 1
      %p191 = por %p189, %p190
      %p193 = scmp.ne.s32.totalorder %s178, %s192
      %p194 = scmp.eq.s32.totalorder %s32, 0
      %p195 = por %p193, %p194
      %s197 = sadd.s32 %s196, 1
      %p200 = scmp.eq.s32.totalorder %s26, 1
      %p201 = scmp.ne.s32.totalorder %s196, %s198
      %p202 = scmp.eq.s32.totalorder %s26, 0
      %p203 = por %p201, %p202
      %p204 = scmp.ne.s32.totalorder %s196, %s198
      %p205 = scmp.eq.s32.totalorder %s31, 1
      %p206 = por %p204, %p205
      %p207 = scmp.ne.s32.totalorder %s198, %s199
      %p208 = scmp.eq.s32.totalorder %s31, 0
      %p209 = por %p207, %p208
      %p210 = scmp.ne.s32.totalorder %s198, %s199
      %p211 = scmp.eq.s32.totalorder %s32, 1
      %p212 = por %p210, %p211
      %p214 = scmp.ne.s32.totalorder %s199, %s213
      %p215 = scmp.eq.s32.totalorder %s32, 0
      %p216 = por %p214, %p215
      %s218 = sadd.s32 %s217, 1
      %p221 = scmp.eq.s32.totalorder %s26, 1
      %p222 = scmp.ne.s32.totalorder %s217, %s219
      %p223 = scmp.eq.s32.totalorder %s26, 0
      %p224 = por %p222, %p223
      %p225 = scmp.ne.s32.totalorder %s217, %s219
      %p226 = scmp.eq.s32.totalorder %s31, 1
      %p227 = por %p225, %p226
      %p228 = scmp.ne.s32.totalorder %s219, %s220
      %p229 = scmp.eq.s32.totalorder %s31, 0
      %p230 = por %p228, %p229
      %p231 = scmp.ne.s32.totalorder %s219, %s220
      %p232 = scmp.eq.s32.totalorder %s32, 1
      %p233 = por %p231, %p232
      %p235 = scmp.ne.s32.totalorder %s220, %s234
      %p236 = scmp.eq.s32.totalorder %s32, 0
      %p237 = por %p235, %p236
      %s238 = ssub.s32 %s26, %s33
      %p239 = scmp.eq.s32.totalorder %s238, 0
      %s241 = sadd.s32 %s240, 1
      %s242 = scalar_select %p239, %s240, %s241
      %p245 = pneg %p239
      %p246 = scmp.eq.s32.totalorder %s26, 1
      %p247 = por %p245, %p246
      %p248 = scmp.ne.s32.totalorder %s240, %s243
      %p249 = scmp.eq.s32.totalorder %s26, 0
      %p250 = por %p248, %p249
      %p251 = scmp.ne.s32.totalorder %s240, %s243
      %p252 = scmp.eq.s32.totalorder %s31, 1
      %p253 = por %p251, %p252
      %p254 = scmp.ne.s32.totalorder %s243, %s244
      %p255 = scmp.eq.s32.totalorder %s31, 0
      %p256 = por %p254, %p255
      %p257 = scmp.ne.s32.totalorder %s243, %s244
      %p258 = scmp.eq.s32.totalorder %s32, 1
      %p259 = por %p257, %p258
      %p261 = scmp.ne.s32.totalorder %s244, %s260
      %p262 = scmp.eq.s32.totalorder %s32, 0
      %p263 = por %p261, %p262
      %p264 = scmp.le.s32.totalorder 1, %s26
      %p265 = scmp.lt.s32.totalorder %s26, 3
      %p266 = pnand %p264, %p265
      %p267 = pneg %p266
      // Predicated region
      $region9: #{tpu_custom_call.1} parent=5 // pred_check
        _
      $region10: #{tpu_custom_call.1} parent=5 // pred_check_branch
        %269 = sbr.rel (%p266) target = $region12
      $region11: #{tpu_custom_call.1} parent=5 // pred_region
        %s270 = ssub.s32 %s26, 1
        // Predicated region
        $region13: #{tpu_custom_call.1} parent=11 // pred_check
          %p271 = pneg %p125
        $region14: #{tpu_custom_call.1} parent=11 // pred_check_branch
          %273 = sbr.rel (%p271) target = $region16
        $region15: #{tpu_custom_call.1} parent=11 // pred_region
          %s275 = ssub.s32 1024, 1024
          %276 = vsyncadd [#allocation9], %s275
          %s277 = sshll.u32 [#allocation8], 4
          %s278 = int_to_ptr.vmem [resolvable:$true] %s277
          %283 = dma.hbm_to_vmem [thread:$0]  %s3, 1024, %s278, [#allocation9], 64, 64, 4
        $region16: #{tpu_custom_call.1} parent=11 // pred_fallthru
          _
        // Predicated region
        $region17: #{tpu_custom_call.1} parent=11 // pred_check
          %p284 = pneg %p146
        $region18: #{tpu_custom_call.1} parent=11 // pred_check_branch
          %286 = sbr.rel (%p284) target = $region20
        $region19: #{tpu_custom_call.1} parent=11 // pred_region
          _
        $region20: #{tpu_custom_call.1} parent=11 // pred_fallthru
          _
        // Predicated region
        $region21: #{tpu_custom_call.1} parent=11 // pred_check
          %p287 = pneg %p167
        $region22: #{tpu_custom_call.1} parent=11 // pred_check_branch
          %289 = sbr.rel (%p287) target = $region24
        $region23: #{tpu_custom_call.1} parent=11 // pred_region
          %s291 = ssub.s32 2048, 2048
          %292 = vsyncadd [#allocation9], %s291
          %s293 = sshll.u32 [#allocation10], 4
          %s294 = int_to_ptr.vmem [resolvable:$true] %s293
          %299 = dma.hbm_to_vmem [thread:$0]  %s5, 2048, %s294, [#allocation9], 128, 128, 8
        $region24: #{tpu_custom_call.1} parent=11 // pred_fallthru
          _
        // Predicated region
        $region25: #{tpu_custom_call.1} parent=11 // pred_check
          %p300 = pneg %p188
        $region26: #{tpu_custom_call.1} parent=11 // pred_check_branch
          %302 = sbr.rel (%p300) target = $region28
        $region27: #{tpu_custom_call.1} parent=11 // pred_region
          _
        $region28: #{tpu_custom_call.1} parent=11 // pred_fallthru
          _
        // Predicated region
        $region29: #{tpu_custom_call.1} parent=11 // pred_check
          %p303 = pneg %p209
        $region30: #{tpu_custom_call.1} parent=11 // pred_check_branch
          %305 = sbr.rel (%p303) target = $region32
        $region31: #{tpu_custom_call.1} parent=11 // pred_region
          %s307 = ssub.s32 1024, 1024
          %308 = vsyncadd [#allocation12], %s307
          %s309 = sshll.u32 [#allocation11], 4
          %s310 = int_to_ptr.vmem [resolvable:$true] %s309
          %315 = dma.hbm_to_vmem [thread:$0]  %s7, 1024, %s310, [#allocation12], 64, 64, 4
        $region32: #{tpu_custom_call.1} parent=11 // pred_fallthru
          _
        // Predicated region
        $region33: #{tpu_custom_call.1} parent=11 // pred_check
          %p316 = pneg %p230
        $region34: #{tpu_custom_call.1} parent=11 // pred_check_branch
          %318 = sbr.rel (%p316) target = $region36
        $region35: #{tpu_custom_call.1} parent=11 // pred_region
          _
        $region36: #{tpu_custom_call.1} parent=11 // pred_fallthru
          _
      $region12: #{tpu_custom_call.1} parent=5 // pred_fallthru
        _
      %p319 = scmp.lt.s32.totalorder %s26, 2
      // Predicated region
      $region37: #{tpu_custom_call.1} parent=5 // pred_check
        %p320 = pneg %p319
      $region38: #{tpu_custom_call.1} parent=5 // pred_check_branch
        %322 = sbr.rel (%p320) target = $region40
      $region39: #{tpu_custom_call.1} parent=5 // pred_region
        // Predicated region
        $region41: #{tpu_custom_call.1} parent=39 // pred_check
          %p323 = pneg %p46
        $region42: #{tpu_custom_call.1} parent=39 // pred_check_branch
          %325 = sbr.rel (%p323) target = $region44
        $region43: #{tpu_custom_call.1} parent=39 // pred_region
          %s326 = sand.u32 %s36, 1
          %s327 = scalar_lea.sflag [#allocation3], %s326
          %s328 = sand.u32 %s36, 1
          %s329 = smul.addr %s328, 8
          %s330 = scalar_lea.vmem [#allocation2], %s329
          %s331 = smul.u32 2, %s26
          %s333 = ssub.s32 128, 128
          %334 = vsyncadd %s327, %s333
          %s335 = smul.addr %s331, 64
          %s336 = scalar_lea.hbm %s0, %s335
          %s337 = sshll.u32 %s330, 4
          %s338 = int_to_ptr.vmem [resolvable:$true] %s337
          %343 = dma.hbm_to_vmem [thread:$0]  %s336, 128, %s338, %s327, 64, 64, 4
        $region44: #{tpu_custom_call.1} parent=39 // pred_fallthru
          _
        // Predicated region
        $region45: #{tpu_custom_call.1} parent=39 // pred_check
          %p344 = pneg %p72
        $region46: #{tpu_custom_call.1} parent=39 // pred_check_branch
          %346 = sbr.rel (%p344) target = $region48
        $region47: #{tpu_custom_call.1} parent=39 // pred_region
          %s347 = sand.u32 %s26, 1
          %s348 = scalar_lea.sflag [#allocation6], %s347
          %s349 = sand.u32 %s62, 1
          %s350 = smul.addr %s349, 8
          %s351 = scalar_lea.vmem [#allocation5], %s350
          %s352 = smul.u32 2, %s26
          %s354 = ssub.s32 128, 128
          %355 = vsyncadd %s348, %s354
          %s356 = smul.addr %s352, 64
          %s357 = scalar_lea.hbm %s1, %s356
          %s358 = sshll.u32 %s351, 4
          %s359 = int_to_ptr.vmem [resolvable:$true] %s358
          %364 = dma.hbm_to_vmem [thread:$0]  %s357, 128, %s359, %s348, 64, 64, 4
        $region48: #{tpu_custom_call.1} parent=39 // pred_fallthru
          _
        // Predicated region
        $region49: #{tpu_custom_call.1} parent=39 // pred_check
          %p365 = pneg %p98
        $region50: #{tpu_custom_call.1} parent=39 // pred_check_branch
          %367 = sbr.rel (%p365) target = $region52
        $region51: #{tpu_custom_call.1} parent=39 // pred_region
          %s368 = sand.u32 %s26, 1
          %s369 = scalar_lea.sflag [#allocation6], %s368
          %s370 = sand.u32 %s88, 1
          %s371 = smul.addr %s370, 8
          %s372 = scalar_lea.vmem [#allocation7], %s371
          %s374 = ssub.s32 128, 128
          %375 = vsyncadd %s369, %s374
          %s376 = smul.addr %s26, 2
          %s377 = smul.addr %s376, 64
          %s378 = scalar_lea.hbm %s2, %s377
          %s379 = sshll.u32 %s372, 4
          %s380 = int_to_ptr.vmem [resolvable:$true] %s379
          %385 = dma.hbm_to_vmem [thread:$0]  %s378, 128, %s380, %s369, 64, 64, 4
        $region52: #{tpu_custom_call.1} parent=39 // pred_fallthru
          _
      $region40: #{tpu_custom_call.1} parent=5 // pred_fallthru
        _
      %p386 = scmp.le.s32.totalorder 1, %s26
      %p387 = scmp.lt.s32.totalorder %s26, 3
      %p388 = pnand %p386, %p387
      %p389 = pneg %p388
      // Predicated region
      $region53: #{tpu_custom_call.1} parent=5 // pred_check
        _
      $region54: #{tpu_custom_call.1} parent=5 // pred_check_branch
        %391 = sbr.rel (%p388) target = $region56
      $region55: #{tpu_custom_call.1} parent=5 // pred_region
        %s392 = ssub.s32 %s26, 1
        %s393 = sand.u32 %s39, 1
        %s394 = scalar_lea.sflag [#allocation3], %s393
        %s395 = sand.u32 %s39, 1
        %s396 = smul.addr %s395, 8
        %s397 = scalar_lea.vmem [#allocation2], %s396
        // Predicated region
        $region57: #{tpu_custom_call.1} parent=55 // pred_check
          %p398 = pneg %p52
        $region58: #{tpu_custom_call.1} parent=55 // pred_check_branch
          %400 = sbr.rel (%p398) target = $region60
        $region59: #{tpu_custom_call.1} parent=55 // pred_region
          %401 = dma.done %s394, 128
        $region60: #{tpu_custom_call.1} parent=55 // pred_fallthru
          _
        %s402 = sand.u32 %s31, 1
        %s403 = scalar_lea.sflag [#allocation6], %s402
        %s404 = sand.u32 %s65, 1
        %s405 = smul.addr %s404, 8
        %s406 = scalar_lea.vmem [#allocation5], %s405
        // Predicated region
        $region61: #{tpu_custom_call.1} parent=55 // pred_check
          %p407 = pneg %p78
        $region62: #{tpu_custom_call.1} parent=55 // pred_check_branch
          %409 = sbr.rel (%p407) target = $region64
        $region63: #{tpu_custom_call.1} parent=55 // pred_region
          %410 = dma.done %s403, 128
        $region64: #{tpu_custom_call.1} parent=55 // pred_fallthru
          _
        %s411 = sand.u32 %s31, 1
        %s412 = scalar_lea.sflag [#allocation6], %s411
        %s413 = sand.u32 %s91, 1
        %s414 = smul.addr %s413, 8
        %s415 = scalar_lea.vmem [#allocation7], %s414
        // Predicated region
        $region65: #{tpu_custom_call.1} parent=55 // pred_check
          %p416 = pneg %p104
        $region66: #{tpu_custom_call.1} parent=55 // pred_check_branch
          %418 = sbr.rel (%p416) target = $region68
        $region67: #{tpu_custom_call.1} parent=55 // pred_region
          %419 = dma.done %s412, 128
        $region68: #{tpu_custom_call.1} parent=55 // pred_fallthru
          _
        // Predicated region
        $region69: #{tpu_custom_call.1} parent=55 // pred_check
          %p420 = pneg %p125
        $region70: #{tpu_custom_call.1} parent=55 // pred_check_branch
          %422 = sbr.rel (%p420) target = $region72
        $region71: #{tpu_custom_call.1} parent=55 // pred_region
          %423 = dma.done [#allocation9], 1024
        $region72: #{tpu_custom_call.1} parent=55 // pred_fallthru
          _
        // Predicated region
        $region73: #{tpu_custom_call.1} parent=55 // pred_check
          %p424 = pneg %p167
        $region74: #{tpu_custom_call.1} parent=55 // pred_check_branch
          %426 = sbr.rel (%p424) target = $region76
        $region75: #{tpu_custom_call.1} parent=55 // pred_region
          %427 = dma.done [#allocation9], 2048
        $region76: #{tpu_custom_call.1} parent=55 // pred_fallthru
          _
        // Predicated region
        $region77: #{tpu_custom_call.1} parent=55 // pred_check
          %p428 = pneg %p209
        $region78: #{tpu_custom_call.1} parent=55 // pred_check_branch
          %430 = sbr.rel (%p428) target = $region80
        $region79: #{tpu_custom_call.1} parent=55 // pred_region
          %431 = dma.done [#allocation12], 1024
        $region80: #{tpu_custom_call.1} parent=55 // pred_fallthru
          _
        %s432 = sand.u32 %s39, 1
        %s433 = scalar_lea.sflag [#allocation3], %s432
        %s434 = sand.u32 %s39, 1
        %s435 = smul.addr %s434, 8
        %s436 = scalar_lea.vmem [#allocation2], %s435
        %p437 = pneg %p52
        %p438 = pneg %p49
        %s439 = sand.u32 %s31, 1
        %s440 = scalar_lea.sflag [#allocation6], %s439
        %s441 = sand.u32 %s65, 1
        %s442 = smul.addr %s441, 8
        %s443 = scalar_lea.vmem [#allocation5], %s442
        %p444 = pneg %p78
        %p445 = pneg %p75
        %s446 = sand.u32 %s31, 1
        %s447 = scalar_lea.sflag [#allocation6], %s446
        %s448 = sand.u32 %s91, 1
        %s449 = smul.addr %s448, 8
        %s450 = scalar_lea.vmem [#allocation7], %s449
        %p451 = pneg %p104
        %p452 = pneg %p101
        %p453 = pneg %p125
        %p454 = pneg %p122
        %p455 = pneg %p146
        %p456 = pneg %p143
        %p457 = pneg %p167
        %p458 = pneg %p164
        %p459 = pneg %p188
        %p460 = pneg %p185
        %p461 = pneg %p209
        %p462 = pneg %p206
        %p463 = pneg %p230
        %p464 = pneg %p227
        %p465 = pneg %p256
        %p466 = pneg %p253
        %s467 = sand.u32 %s243, 1
        %s468 = scalar_lea.sflag [#allocation4], %s467
        %s469 = sand.u32 %s243, 1
        %s470 = smul.addr %s469, 8
        %s471 = scalar_lea.vmem [#allocation13], %s470
        %s472 = smul.u32 2, %s31
        %s473 = smul.u32 2, %s31
        %s474 = smul.u32 2, %s31
        %v476 = vld [vmem:[%s397] sm:$0xf]
        %v477 = vld [vmem:[%s397 + $0x4] sm:$0xf]
        %v478 = vld [vmem:[#allocation8] sm:$0xf]
        %v479 = vld [vmem:[#allocation8 + $0x4] sm:$0xf]
        %v480 = vld [vmem:[#allocation8 + $0x8] sm:$0xf]
        %v481 = vld [vmem:[#allocation8 + $0xc] sm:$0xf]
        %v482 = vld [vmem:[#allocation8 + $0x10] sm:$0xf]
        %v483 = vld [vmem:[#allocation8 + $0x14] sm:$0xf]
        %v484 = vld [vmem:[#allocation8 + $0x18] sm:$0xf]
        %v485 = vld [vmem:[#allocation8 + $0x1c] sm:$0xf]
        %v486 = vld [vmem:[#allocation8 + $0x20] sm:$0xf]
        %v487 = vld [vmem:[#allocation8 + $0x24] sm:$0xf]
        %v488 = vld [vmem:[#allocation8 + $0x28] sm:$0xf]
        %v489 = vld [vmem:[#allocation8 + $0x2c] sm:$0xf]
        %v490 = vld [vmem:[#allocation8 + $0x30] sm:$0xf]
        %v491 = vld [vmem:[#allocation8 + $0x34] sm:$0xf]
        %v492 = vld [vmem:[#allocation8 + $0x38] sm:$0xf]
        %v493 = vld [vmem:[#allocation8 + $0x3c] sm:$0xf]
        %v494 = vld [vmem:[%s4] sm:$0x1]
        %v496 = vlaneseq
        %v497 = vshrl.u32 %v496, 7
        %v498 = vsub.s32 0, %v497
        %v499 = vrot.slane %v494, %v498
        %v503 = vunpack.c.l.b16 %v476
        %v504 = vunpack.c.l.b16 %v477
        %v505 = vpack.c.b16 %v504, %v503
        %v523 = vunpack.c.l.b16 %v478
        %v524 = vunpack.c.l.b16 %v479
        %v525 = vunpack.c.l.b16 %v480
        %v526 = vunpack.c.l.b16 %v481
        %v527 = vunpack.c.l.b16 %v482
        %v528 = vunpack.c.l.b16 %v483
        %v529 = vunpack.c.l.b16 %v484
        %v530 = vunpack.c.l.b16 %v485
        %v531 = vunpack.c.l.b16 %v486
        %v532 = vunpack.c.l.b16 %v487
        %v533 = vunpack.c.l.b16 %v488
        %v534 = vunpack.c.l.b16 %v489
        %v535 = vunpack.c.l.b16 %v490
        %v536 = vunpack.c.l.b16 %v491
        %v537 = vunpack.c.l.b16 %v492
        %v538 = vunpack.c.l.b16 %v493
        %v539 = vpack.c.b16 %v524, %v523
        %v540 = vpack.c.b16 %v526, %v525
        %v541 = vpack.c.b16 %v528, %v527
        %v542 = vpack.c.b16 %v530, %v529
        %v543 = vpack.c.b16 %v532, %v531
        %v544 = vpack.c.b16 %v534, %v533
        %v545 = vpack.c.b16 %v536, %v535
        %v546 = vpack.c.b16 %v538, %v537
        %555 = vmatprep.subr.bf16.mxu0 0
        %556 = vmatpush1.bf16.msra.mxu0 %v546
        %557 = vmatprep.subr.bf16.mxu0 0
        %558 = vmatpush1.bf16.msra.mxu0 %v545
        %559 = vmatprep.subr.bf16.mxu0 0
        %560 = vmatpush1.bf16.msra.mxu0 %v544
        %561 = vmatprep.subr.bf16.mxu0 0
        %562 = vmatpush1.bf16.msra.mxu0 %v543
        %563 = vmatprep.subr.bf16.mxu0 0
        %564 = vmatpush1.bf16.msra.mxu0 %v542
        %565 = vmatprep.subr.bf16.mxu0 0
        %566 = vmatpush1.bf16.msra.mxu0 %v541
        %567 = vmatprep.subr.bf16.mxu0 0
        %568 = vmatpush1.bf16.msra.mxu0 %v540
        %569 = vmatprep.subr.bf16.mxu0 0
        %570 = vmatpush1.bf16.msra.mxu0 %v539
        %571 = vmatprep.subr.bf16.mxu0 0
        %572 = vmatpush2.bf16.msra.mxu0 0
        %573 = vmatprep.subr.bf16.mxu0 0
        %574 = vmatpush2.bf16.msra.mxu0 0
        %575 = vmatprep.subr.bf16.mxu0 0
        %576 = vmatpush2.bf16.msra.mxu0 0
        %577 = vmatprep.subr.bf16.mxu0 0
        %578 = vmatpush2.bf16.msra.mxu0 0
        %579 = vmatprep.subr.bf16.mxu0 0
        %580 = vmatpush2.bf16.msra.mxu0 0
        %581 = vmatprep.subr.bf16.mxu0 0
        %582 = vmatpush2.bf16.msra.mxu0 0
        %583 = vmatprep.subr.bf16.mxu0 0
        %584 = vmatpush2.bf16.msra.mxu0 0
        %585 = vmatprep.subr.bf16.mxu0 0
        %586 = vmatpush2.bf16.msra.mxu0 0
        %587 = vmatprep.mubr.bf16.mxu0 0
        %588 = vmatmul.mubr.bf16.gmra.mxu0 %v505
        %v589 = vpop.f32.mrf.mxu0
        %v590 = vadd.f32 %v499, %v589
        %v591 = vpop.f32.mrf.mxu0
        %v592 = vpop.f32.mrf.mxu0
        %v593 = vadd.f32 %v499, %v592
        %v594 = vpop.f32.mrf.mxu0
        %595 = vdwg.mxu0
        %v596 = vld [vmem:[%s406] sm:$0xf]
        %v597 = vld [vmem:[%s406 + $0x4] sm:$0xf]
        %v598 = vld [vmem:[#allocation10] sm:$0xff]
        %v599 = vld [vmem:[#allocation10 + $0x8] sm:$0xff]
        %v600 = vld [vmem:[#allocation10 + $0x10] sm:$0xff]
        %v601 = vld [vmem:[#allocation10 + $0x18] sm:$0xff]
        %v602 = vld [vmem:[#allocation10 + $0x20] sm:$0xff]
        %v603 = vld [vmem:[#allocation10 + $0x28] sm:$0xff]
        %v604 = vld [vmem:[#allocation10 + $0x30] sm:$0xff]
        %v605 = vld [vmem:[#allocation10 + $0x38] sm:$0xff]
        %v606 = vld [vmem:[#allocation10 + $0x40] sm:$0xff]
        %v607 = vld [vmem:[#allocation10 + $0x48] sm:$0xff]
        %v608 = vld [vmem:[#allocation10 + $0x50] sm:$0xff]
        %v609 = vld [vmem:[#allocation10 + $0x58] sm:$0xff]
        %v610 = vld [vmem:[#allocation10 + $0x60] sm:$0xff]
        %v611 = vld [vmem:[#allocation10 + $0x68] sm:$0xff]
        %v612 = vld [vmem:[#allocation10 + $0x70] sm:$0xff]
        %v613 = vld [vmem:[#allocation10 + $0x78] sm:$0xff]
        %v614 = vld [vmem:[%s6] sm:$0x3]
        %v616 = vlaneseq
        %v617 = vshrl.u32 %v616, 7
        %v618 = vsub.s32 0, %v617
        %v619 = vrot.slane %v614, %v618
        %v620 = vlaneseq
        %v621 = vshrl.u32 %v620, 7
        %v622 = vsub.s32 1, %v621
        %v623 = vrot.slane %v614, %v622
        %v628 = vunpack.c.l.b16 %v596
        %v629 = vunpack.c.l.b16 %v597
        %v630 = vpack.c.b16 %v629, %v628
        %v648 = vunpack.c.l.b16 %v598
        %v649 = vunpack.c.h.b16 %v598
        %v650 = vunpack.c.l.b16 %v599
        %v651 = vunpack.c.h.b16 %v599
        %v652 = vunpack.c.l.b16 %v600
        %v653 = vunpack.c.h.b16 %v600
        %v654 = vunpack.c.l.b16 %v601
        %v655 = vunpack.c.h.b16 %v601
        %v656 = vunpack.c.l.b16 %v602
        %v657 = vunpack.c.h.b16 %v602
        %v658 = vunpack.c.l.b16 %v603
        %v659 = vunpack.c.h.b16 %v603
        %v660 = vunpack.c.l.b16 %v604
        %v661 = vunpack.c.h.b16 %v604
        %v662 = vunpack.c.l.b16 %v605
        %v663 = vunpack.c.h.b16 %v605
        %v664 = vunpack.c.l.b16 %v606
        %v665 = vunpack.c.h.b16 %v606
        %v666 = vunpack.c.l.b16 %v607
        %v667 = vunpack.c.h.b16 %v607
        %v668 = vunpack.c.l.b16 %v608
        %v669 = vunpack.c.h.b16 %v608
        %v670 = vunpack.c.l.b16 %v609
        %v671 = vunpack.c.h.b16 %v609
        %v672 = vunpack.c.l.b16 %v610
        %v673 = vunpack.c.h.b16 %v610
        %v674 = vunpack.c.l.b16 %v611
        %v675 = vunpack.c.h.b16 %v611
        %v676 = vunpack.c.l.b16 %v612
        %v677 = vunpack.c.h.b16 %v612
        %v678 = vunpack.c.l.b16 %v613
        %v679 = vunpack.c.h.b16 %v613
        %v680 = vpack.c.b16 %v650, %v648
        %v681 = vpack.c.b16 %v651, %v649
        %v682 = vpack.c.b16 %v654, %v652
        %v683 = vpack.c.b16 %v655, %v653
        %v684 = vpack.c.b16 %v658, %v656
        %v685 = vpack.c.b16 %v659, %v657
        %v686 = vpack.c.b16 %v662, %v660
        %v687 = vpack.c.b16 %v663, %v661
        %v688 = vpack.c.b16 %v666, %v664
        %v689 = vpack.c.b16 %v667, %v665
        %v690 = vpack.c.b16 %v670, %v668
        %v691 = vpack.c.b16 %v671, %v669
        %v692 = vpack.c.b16 %v674, %v672
        %v693 = vpack.c.b16 %v675, %v673
        %v694 = vpack.c.b16 %v678, %v676
        %v695 = vpack.c.b16 %v679, %v677
        %712 = vmatprep.subr.bf16.mxu0 %v695
        %713 = vmatpush1.bf16.msra.mxu0 %v694
        %714 = vmatprep.subr.bf16.mxu0 %v693
        %715 = vmatpush1.bf16.msra.mxu0 %v692
        %716 = vmatprep.subr.bf16.mxu0 %v691
        %717 = vmatpush1.bf16.msra.mxu0 %v690
        %718 = vmatprep.subr.bf16.mxu0 %v689
        %719 = vmatpush1.bf16.msra.mxu0 %v688
        %720 = vmatprep.subr.bf16.mxu0 %v687
        %721 = vmatpush1.bf16.msra.mxu0 %v686
        %722 = vmatprep.subr.bf16.mxu0 %v685
        %723 = vmatpush1.bf16.msra.mxu0 %v684
        %724 = vmatprep.subr.bf16.mxu0 %v683
        %725 = vmatpush1.bf16.msra.mxu0 %v682
        %726 = vmatprep.subr.bf16.mxu0 %v681
        %727 = vmatpush1.bf16.msra.mxu0 %v680
        %728 = vmatprep.subr.bf16.mxu0 0
        %729 = vmatpush2.bf16.msra.mxu0 0
        %730 = vmatprep.subr.bf16.mxu0 0
        %731 = vmatpush2.bf16.msra.mxu0 0
        %732 = vmatprep.subr.bf16.mxu0 0
        %733 = vmatpush2.bf16.msra.mxu0 0
        %734 = vmatprep.subr.bf16.mxu0 0
        %735 = vmatpush2.bf16.msra.mxu0 0
        %736 = vmatprep.subr.bf16.mxu0 0
        %737 = vmatpush2.bf16.msra.mxu0 0
        %738 = vmatprep.subr.bf16.mxu0 0
        %739 = vmatpush2.bf16.msra.mxu0 0
        %740 = vmatprep.subr.bf16.mxu0 0
        %741 = vmatpush2.bf16.msra.mxu0 0
        %742 = vmatprep.subr.bf16.mxu0 0
        %743 = vmatpush2.bf16.msra.mxu0 0
        %744 = vmatprep.mubr.bf16.mxu0 0
        %745 = vmatmul.mubr.bf16.gmra.mxu0 %v630
        %v746 = vpop.f32.mrf.mxu0
        %v747 = vadd.f32 %v619, %v746
        %v748 = vpop.f32.mrf.mxu0
        %v749 = vadd.f32 %v623, %v748
        %v750 = vpop.f32.mrf.mxu0
        %v751 = vadd.f32 %v619, %v750
        %v752 = vpop.f32.mrf.mxu0
        %v753 = vadd.f32 %v623, %v752
        %754 = vdwg.mxu0
        %v755 = vld [vmem:[%s415] sm:$0xf]
        %v756 = vld [vmem:[%s415 + $0x4] sm:$0xf]
        %v757 = vunpack.c.l.bf16 %v755
        %v758 = vunpack.c.l.bf16 %v756
        %759 = vmatprep.subr.mxu0 0.0
        %760 = vmatpush1.xpose.msra.mxu0 0.0
        %761 = vmatprep.subr.mxu0 0.0
        %762 = vmatpush1.xpose.msra.mxu0 0.0
        %763 = vmatprep.subr.mxu0 0.0
        %764 = vmatpush1.xpose.msra.mxu0 0.0
        %765 = vmatprep.subr.mxu0 0.0
        %766 = vmatpush1.xpose.msra.mxu0 0.0
        %767 = vmatprep.subr.mxu0 0.0
        %768 = vmatpush1.xpose.msra.mxu0 0.0
        %769 = vmatprep.subr.mxu0 0.0
        %770 = vmatpush1.xpose.msra.mxu0 0.0
        %771 = vmatprep.subr.mxu0 0.0
        %772 = vmatpush1.xpose.msra.mxu0 0.0
        %773 = vmatprep.subr.mxu0 0.0
        %774 = vmatpush1.xpose.msra.mxu0 0.0
        %775 = vmatprep.subr.mxu0 0.0
        %776 = vmatpush1.xpose.msra.mxu0 0.0
        %777 = vmatprep.subr.mxu0 0.0
        %778 = vmatpush1.xpose.msra.mxu0 0.0
        %779 = vmatprep.subr.mxu0 0.0
        %780 = vmatpush1.xpose.msra.mxu0 0.0
        %781 = vmatprep.subr.mxu0 0.0
        %782 = vmatpush1.xpose.msra.mxu0 0.0
        %783 = vmatprep.subr.mxu0 0.0
        %784 = vmatpush1.xpose.msra.mxu0 0.0
        %785 = vmatprep.subr.mxu0 0.0
        %786 = vmatpush1.xpose.msra.mxu0 0.0
        %787 = vmatprep.subr.mxu0 0.0
        %788 = vmatpush1.xpose.msra.mxu0 %v751
        %789 = vmatprep.subr.mxu0 0.0
        %790 = vmatpush1.xpose.msra.mxu0 %v747
        %791 = vmatprep.subr.mxu0 0.0
        %792 = vmatpush2.xpose.msra.mxu0 0.0
        %793 = vmatprep.subr.mxu0 0.0
        %794 = vmatpush2.xpose.msra.mxu0 0.0
        %795 = vmatprep.subr.mxu0 0.0
        %796 = vmatpush2.xpose.msra.mxu0 0.0
        %797 = vmatprep.subr.mxu0 0.0
        %798 = vmatpush2.xpose.msra.mxu0 0.0
        %799 = vmatprep.subr.mxu0 0.0
        %800 = vmatpush2.xpose.msra.mxu0 0.0
        %801 = vmatprep.subr.mxu0 0.0
        %802 = vmatpush2.xpose.msra.mxu0 0.0
        %803 = vmatprep.subr.mxu0 0.0
        %804 = vmatpush2.xpose.msra.mxu0 0.0
        %805 = vmatprep.subr.mxu0 0.0
        %806 = vmatpush2.xpose.msra.mxu0 0.0
        %807 = vmatprep.subr.mxu0 0.0
        %808 = vmatpush2.xpose.msra.mxu0 0.0
        %809 = vmatprep.subr.mxu0 0.0
        %810 = vmatpush2.xpose.msra.mxu0 0.0
        %811 = vmatprep.subr.mxu0 0.0
        %812 = vmatpush2.xpose.msra.mxu0 0.0
        %813 = vmatprep.subr.mxu0 0.0
        %814 = vmatpush2.xpose.msra.mxu0 0.0
        %815 = vmatprep.subr.mxu0 0.0
        %816 = vmatpush2.xpose.msra.mxu0 0.0
        %817 = vmatprep.subr.mxu0 0.0
        %818 = vmatpush2.xpose.msra.mxu0 0.0
        %819 = vmatprep.subr.mxu0 0.0
        %820 = vmatpush2.xpose.msra.mxu0 0.0
        %821 = vmatprep.subr.mxu0 0.0
        %822 = vmatpush2.xpose.msra.mxu0 0.0
        %823 = vmatprep.mubr.f32.mxu0 0.0
        %824 = vmatmul.mubr.f32.gmra.mxu0 %v590
        %v825 = vpop.f32.mrf.mxu0
        %v826 = vadd.f32 %v757, %v825
        %v827 = vpop.f32.mrf.mxu0
        %828 = vmatprep.mubr.f32.mxu0 0.0
        %829 = vmatmul.mubr.f32.gmra.mxu0 %v593
        %v830 = vpop.f32.mrf.mxu0
        %v831 = vadd.f32 %v758, %v830
        %v832 = vpop.f32.mrf.mxu0
        %833 = vdwg.mxu0
        %v834 = vlaneseq
        %v835 = vand.u32 %v834, 127
        %vm836 = vcmp.ge.s32.totalorder %v835, 8
        %v837 = vsel %vm836, -1e+30, %v826
        %v838 = vsel %vm836, -1e+30, %v831
        %vm839 = vcmask 130048
        %v840 = vsel %vm839, %v837, -inf
        %841 = vmax.xlane.f32.xlu0 %v840
        %v842 = vpop.xlane.xlu0 %841
        %v843 = vsel %vm839, %v838, -inf
        %844 = vmax.xlane.f32.xlu0 %v843
        %v845 = vpop.xlane.xlu0 %844
        %v846 = vsub.f32 %v837, %v842
        %v847 = vsub.f32 %v838, %v845
        %v848 = vmul.f32 %v846, 1.442695
        %v849 = vpow.pop %v848
        %v850 = vmul.f32 %v847, 1.442695
        %v851 = vpow.pop %v850
        %v852 = vsel %vm839, %v849, 0.0
        %853 = vadd.xlane.f32.xlu0 %v852
        %v854 = vpop.xlane.xlu0 %853
        %v855 = vsel %vm839, %v851, 0.0
        %856 = vadd.xlane.f32.xlu0 %v855
        %v857 = vpop.xlane.xlu0 %856
        %v858 = vrcp.pop %v854
        %v859 = vrcp.pop %v857
        %v860 = vmul.f32 %v849, %v858
        %v861 = vmul.f32 %v851, %v859
        %v863 = vsel %vm839, %v860, 0
        %v866 = vsel %vm839, %v861, 0
        %868 = vmatprep.subr.mxu0 0.0
        %869 = vmatpush1.msra.mxu0 0.0
        %870 = vmatprep.subr.mxu0 0.0
        %871 = vmatpush1.msra.mxu0 0.0
        %872 = vmatprep.subr.mxu0 0.0
        %873 = vmatpush1.msra.mxu0 0.0
        %874 = vmatprep.subr.mxu0 0.0
        %875 = vmatpush1.msra.mxu0 0.0
        %876 = vmatprep.subr.mxu0 0.0
        %877 = vmatpush1.msra.mxu0 0.0
        %878 = vmatprep.subr.mxu0 0.0
        %879 = vmatpush1.msra.mxu0 0.0
        %880 = vmatprep.subr.mxu0 0.0
        %881 = vmatpush1.msra.mxu0 0.0
        %882 = vmatprep.subr.mxu0 0.0
        %883 = vmatpush1.msra.mxu0 0.0
        %884 = vmatprep.subr.mxu0 0.0
        %885 = vmatpush1.msra.mxu0 0.0
        %886 = vmatprep.subr.mxu0 0.0
        %887 = vmatpush1.msra.mxu0 0.0
        %888 = vmatprep.subr.mxu0 0.0
        %889 = vmatpush1.msra.mxu0 0.0
        %890 = vmatprep.subr.mxu0 0.0
        %891 = vmatpush1.msra.mxu0 0.0
        %892 = vmatprep.subr.mxu0 0.0
        %893 = vmatpush1.msra.mxu0 0.0
        %894 = vmatprep.subr.mxu0 0.0
        %895 = vmatpush1.msra.mxu0 0.0
        %896 = vmatprep.subr.mxu0 0.0
        %897 = vmatpush1.msra.mxu0 %v753
        %898 = vmatprep.subr.mxu0 0.0
        %899 = vmatpush1.msra.mxu0 %v749
        %900 = vmatprep.subr.mxu0 0.0
        %901 = vmatpush2.msra.mxu0 0.0
        %902 = vmatprep.subr.mxu0 0.0
        %903 = vmatpush2.msra.mxu0 0.0
        %904 = vmatprep.subr.mxu0 0.0
        %905 = vmatpush2.msra.mxu0 0.0
        %906 = vmatprep.subr.mxu0 0.0
        %907 = vmatpush2.msra.mxu0 0.0
        %908 = vmatprep.subr.mxu0 0.0
        %909 = vmatpush2.msra.mxu0 0.0
        %910 = vmatprep.subr.mxu0 0.0
        %911 = vmatpush2.msra.mxu0 0.0
        %912 = vmatprep.subr.mxu0 0.0
        %913 = vmatpush2.msra.mxu0 0.0
        %914 = vmatprep.subr.mxu0 0.0
        %915 = vmatpush2.msra.mxu0 0.0
        %916 = vmatprep.subr.mxu0 0.0
        %917 = vmatpush2.msra.mxu0 0.0
        %918 = vmatprep.subr.mxu0 0.0
        %919 = vmatpush2.msra.mxu0 0.0
        %920 = vmatprep.subr.mxu0 0.0
        %921 = vmatpush2.msra.mxu0 0.0
        %922 = vmatprep.subr.mxu0 0.0
        %923 = vmatpush2.msra.mxu0 0.0
        %924 = vmatprep.subr.mxu0 0.0
        %925 = vmatpush2.msra.mxu0 0.0
        %926 = vmatprep.subr.mxu0 0.0
        %927 = vmatpush2.msra.mxu0 0.0
        %928 = vmatprep.subr.mxu0 0.0
        %929 = vmatpush2.msra.mxu0 0.0
        %930 = vmatprep.subr.mxu0 0.0
        %931 = vmatpush2.msra.mxu0 0.0
        %932 = vmatprep.mubr.f32.mxu0 0.0
        %933 = vmatmul.mubr.f32.gmra.mxu0 %v863
        %v934 = vpop.f32.mrf.mxu0
        %v935 = vadd.f32 0.0, %v934
        %v936 = vpop.f32.mrf.mxu0
        %937 = vmatprep.mubr.f32.mxu0 0.0
        %938 = vmatmul.mubr.f32.gmra.mxu0 %v866
        %v939 = vpop.f32.mrf.mxu0
        %v940 = vadd.f32 0.0, %v939
        %v941 = vpop.f32.mrf.mxu0
        %942 = vdwg.mxu0
        %v943 = vld [vmem:[#allocation11] sm:$0xf]
        %v944 = vld [vmem:[#allocation11 + $0x4] sm:$0xf]
        %v945 = vld [vmem:[#allocation11 + $0x8] sm:$0xf]
        %v946 = vld [vmem:[#allocation11 + $0xc] sm:$0xf]
        %v947 = vld [vmem:[#allocation11 + $0x10] sm:$0xf]
        %v948 = vld [vmem:[#allocation11 + $0x14] sm:$0xf]
        %v949 = vld [vmem:[#allocation11 + $0x18] sm:$0xf]
        %v950 = vld [vmem:[#allocation11 + $0x1c] sm:$0xf]
        %v951 = vld [vmem:[#allocation11 + $0x20] sm:$0xf]
        %v952 = vld [vmem:[#allocation11 + $0x24] sm:$0xf]
        %v953 = vld [vmem:[#allocation11 + $0x28] sm:$0xf]
        %v954 = vld [vmem:[#allocation11 + $0x2c] sm:$0xf]
        %v955 = vld [vmem:[#allocation11 + $0x30] sm:$0xf]
        %v956 = vld [vmem:[#allocation11 + $0x34] sm:$0xf]
        %v957 = vld [vmem:[#allocation11 + $0x38] sm:$0xf]
        %v958 = vld [vmem:[#allocation11 + $0x3c] sm:$0xf]
        %v959 = vld [vmem:[%s8] sm:$0x1]
        %v961 = vlaneseq
        %v962 = vshrl.u32 %v961, 7
        %v963 = vsub.s32 0, %v962
        %v964 = vrot.slane %v959, %v963
        %v982 = vunpack.c.l.b16 %v943
        %v983 = vunpack.c.l.b16 %v944
        %v984 = vunpack.c.l.b16 %v945
        %v985 = vunpack.c.l.b16 %v946
        %v986 = vunpack.c.l.b16 %v947
        %v987 = vunpack.c.l.b16 %v948
        %v988 = vunpack.c.l.b16 %v949
        %v989 = vunpack.c.l.b16 %v950
        %v990 = vunpack.c.l.b16 %v951
        %v991 = vunpack.c.l.b16 %v952
        %v992 = vunpack.c.l.b16 %v953
        %v993 = vunpack.c.l.b16 %v954
        %v994 = vunpack.c.l.b16 %v955
        %v995 = vunpack.c.l.b16 %v956
        %v996 = vunpack.c.l.b16 %v957
        %v997 = vunpack.c.l.b16 %v958
        %v998 = vpack.c.b16 %v983, %v982
        %v999 = vpack.c.b16 %v985, %v984
        %v1000 = vpack.c.b16 %v987, %v986
        %v1001 = vpack.c.b16 %v989, %v988
        %v1002 = vpack.c.b16 %v991, %v990
        %v1003 = vpack.c.b16 %v993, %v992
        %v1004 = vpack.c.b16 %v995, %v994
        %v1005 = vpack.c.b16 %v997, %v996
        %1014 = vmatprep.subr.bf16.mxu0 0
        %1015 = vmatpush1.bf16.msra.mxu0 %v1005
        %1016 = vmatprep.subr.bf16.mxu0 0
        %1017 = vmatpush1.bf16.msra.mxu0 %v1004
        %1018 = vmatprep.subr.bf16.mxu0 0
        %1019 = vmatpush1.bf16.msra.mxu0 %v1003
        %1020 = vmatprep.subr.bf16.mxu0 0
        %1021 = vmatpush1.bf16.msra.mxu0 %v1002
        %1022 = vmatprep.subr.bf16.mxu0 0
        %1023 = vmatpush1.bf16.msra.mxu0 %v1001
        %1024 = vmatprep.subr.bf16.mxu0 0
        %1025 = vmatpush1.bf16.msra.mxu0 %v1000
        %1026 = vmatprep.subr.bf16.mxu0 0
        %1027 = vmatpush1.bf16.msra.mxu0 %v999
        %1028 = vmatprep.subr.bf16.mxu0 0
        %1029 = vmatpush1.bf16.msra.mxu0 %v998
        %1030 = vmatprep.subr.bf16.mxu0 0
        %1031 = vmatpush2.bf16.msra.mxu0 0
        %1032 = vmatprep.subr.bf16.mxu0 0
        %1033 = vmatpush2.bf16.msra.mxu0 0
        %1034 = vmatprep.subr.bf16.mxu0 0
        %1035 = vmatpush2.bf16.msra.mxu0 0
        %1036 = vmatprep.subr.bf16.mxu0 0
        %1037 = vmatpush2.bf16.msra.mxu0 0
        %1038 = vmatprep.subr.bf16.mxu0 0
        %1039 = vmatpush2.bf16.msra.mxu0 0
        %1040 = vmatprep.subr.bf16.mxu0 0
        %1041 = vmatpush2.bf16.msra.mxu0 0
        %1042 = vmatprep.subr.bf16.mxu0 0
        %1043 = vmatpush2.bf16.msra.mxu0 0
        %1044 = vmatprep.subr.bf16.mxu0 0
        %1045 = vmatpush2.bf16.msra.mxu0 0
        %1046 = vmatprep.mubr.f32.mxu0 0.0
        %1047 = vmatmul.mubr.f32.gmra.mxu0 %v935
        %v1048 = vpop.f32.mrf.mxu0
        %v1049 = vadd.f32 %v964, %v1048
        %v1050 = vpop.f32.mrf.mxu0
        %1051 = vmatprep.mubr.f32.mxu0 0.0
        %1052 = vmatmul.mubr.f32.gmra.mxu0 %v940
        %v1053 = vpop.f32.mrf.mxu0
        %v1054 = vadd.f32 %v964, %v1053
        %v1055 = vpop.f32.mrf.mxu0
        %1056 = vdwg.mxu0
        %v1057 = vpack.c.bf16 %v1054, %v1049
        %v1059 = vunpack.c.l.b16 %v1057
        %v1060 = vunpack.c.h.b16 %v1057
        %v1061 = vpack.c.b16 %v1059, %v1059
        %v1062 = vpack.c.b16 %v1060, %v1060
        %1065 = vst [vmem:[%s471] sm:$0xf] %v1061
        %1066 = vst [vmem:[%s471 + $0x4] sm:$0xf] %v1062
        %s1067 = sand.u32 %s243, 1
        %s1068 = scalar_lea.sflag [#allocation4], %s1067
        %s1069 = sand.u32 %s243, 1
        %s1070 = smul.addr %s1069, 8
        %s1071 = scalar_lea.vmem [#allocation13], %s1070
        // Predicated region
        $region81: #{tpu_custom_call.1} parent=55 // pred_check
          %p1072 = pneg %p253
        $region82: #{tpu_custom_call.1} parent=55 // pred_check_branch
          %1074 = sbr.rel (%p1072) target = $region84
        $region83: #{tpu_custom_call.1} parent=55 // pred_region
          %s1075 = smul.u32 2, %s31
          %s1077 = ssub.s32 128, 128
          %1078 = vsyncadd %s1068, %s1077
          %s1079 = smul.addr %s1075, 64
          %s1080 = scalar_lea.hbm %s9, %s1079
          %s1081 = sshll.u32 %s1071, 4
          %s1082 = int_to_ptr.vmem [resolvable:$true] %s1081
          %1087 = dma.vmem_to_hbm [thread:$0]  %s1082, 128, %s1080, %s1068, 64, 64, 4
        $region84: #{tpu_custom_call.1} parent=55 // pred_fallthru
          _
      $region56: #{tpu_custom_call.1} parent=5 // pred_fallthru
        _
      %p1088 = scmp.le.s32.totalorder 2, %s26
      // Predicated region
      $region85: #{tpu_custom_call.1} parent=5 // pred_check
        %p1089 = pneg %p1088
      $region86: #{tpu_custom_call.1} parent=5 // pred_check_branch
        %1091 = sbr.rel (%p1089) target = $region88
      $region87: #{tpu_custom_call.1} parent=5 // pred_region
        %s1092 = ssub.s32 %s26, 2
        // Predicated region
        $region89: #{tpu_custom_call.1} parent=87 // pred_check
          %p1093 = pneg %p259
        $region90: #{tpu_custom_call.1} parent=87 // pred_check_branch
          %1095 = sbr.rel (%p1093) target = $region92
        $region91: #{tpu_custom_call.1} parent=87 // pred_region
          %s1096 = sand.u32 %s244, 1
          %s1097 = scalar_lea.sflag [#allocation4], %s1096
          %s1098 = sand.u32 %s244, 1
          %s1099 = smul.addr %s1098, 8
          %s1100 = scalar_lea.vmem [#allocation13], %s1099
          %1101 = dma.done %s1097, 128
        $region92: #{tpu_custom_call.1} parent=87 // pred_fallthru
          _
      $region88: #{tpu_custom_call.1} parent=5 // pred_fallthru
        _
    $region6: #{tpu_custom_call.1} parent=1 // loop_footer
      %s30 = sadd.s32 1, %s26
    $region7: #{tpu_custom_call.1} parent=1 // loop_footer_branch
      %25 = sbr.rel target = $region3
    $region8: #{tpu_custom_call.1} parent=1 // loop_exit
      _
    %1102 = vsyncpa [#allocation3], 1
    %s1103 = scalar_lea.sflag [#allocation3], 1
    %1104 = vsyncpa %s1103, 1
    %1105 = vsyncpa [#allocation6], 1
    %s1106 = scalar_lea.sflag [#allocation6], 1
    %1107 = vsyncpa %s1106, 1
    %1108 = vsyncpa [#allocation9], 1
    %1109 = vsyncpa [#allocation12], 1
    %1110 = vsyncpa [#allocation4], 1
    %s1111 = scalar_lea.sflag [#allocation4], 1
    %1112 = vsyncpa %s1111, 1

</llo_original>
